<compile_context>
chip_gen: v5e
topology: v5e:2x2
jax: 0.10.0
libtpu: 0.0.40
codegen_flags: <defaults>
</compile_context>

<pallas_src>
import numpy as np
import jax
import jax.numpy as jnp
from jax import lax
from jax.experimental import pallas as pl
from jax.experimental.pallas import tpu as pltpu


def _round_up(x, m):
    return (x + m - 1) // m * m


# ---------------------------------------------------------------------------
# Pallas kernels
# ---------------------------------------------------------------------------
def _text_prep_kernel(txt_ref, scale_ref, out_ref):
    """One-shot: out = (scale * t / ||t||).T, zero-padded to [D, C_PAD] bf16.

    scale_ref holds exp(logit_scale) (the scalar exp is done in the wrapper).
    Producing the transposed, lane-padded text block here keeps the per-tile
    kernel free of XLU transposes and removes wrapper-side padding copies.
    """
    t = txt_ref[...].astype(jnp.float32)                                   # [C, D]
    t = t * lax.rsqrt(jnp.sum(t * t, axis=-1, keepdims=True))
    t = t * scale_ref[0, 0]                                                # * exp(logit_scale)
    c, d = t.shape
    c_pad = out_ref.shape[1]
    if c_pad > c:
        t = jnp.concatenate([t, jnp.zeros((c_pad - c, d), jnp.float32)], axis=0)
    out_ref[...] = t.T.astype(out_ref.dtype)                               # [D, C_PAD]


def _mlp_clip_head_kernel(img_ref, tT_ref, w1_ref, b1_ref, w2_ref, b2_ref,
                          logits_ref, feat_ref):
    # img_ref: [TILE_B, D] bf16    tT_ref: [D, C_PAD] bf16 (pre-normalized/scaled/transposed)
    x = img_ref[...]

    # mlp_visual: linear1 -> ReLU -> linear2 (hidden dim zero-padded to 128 lanes).
    # bf16 operands feed the MXU; accumulation / bias / ReLU stay f32.
    h = jnp.dot(x, w1_ref[...], preferred_element_type=jnp.float32) + b1_ref[...]
    h = jnp.maximum(h, 0.0)                                                 # [TILE_B, HID_PAD] f32
    y = jnp.dot(h.astype(jnp.bfloat16), w2_ref[...],
                preferred_element_type=jnp.float32) + b2_ref[...]           # [TILE_B, D] f32

    # image_features / image_features.norm(dim=-1, keepdim=True) via rsqrt (EUP slot).
    y = y * lax.rsqrt(jnp.sum(y * y, axis=-1, keepdims=True))
    yb = y.astype(jnp.bfloat16)

    # logits = (scale * t_norm) applied on the resident text; plain MXU matmul,
    # lane-dense [TILE_B, C_PAD] store.
    logits = jnp.dot(yb, tT_ref[...], preferred_element_type=jnp.float32)

    logits_ref[...] = logits.astype(logits_ref.dtype)
    feat_ref[...] = yb.astype(feat_ref.dtype)


# ---------------------------------------------------------------------------
# Wrapper
# ---------------------------------------------------------------------------
def mlp_custom_clip_head(image_features, text_features, w1, b1, w2, b2,
                         logit_scale, *, tile_b=1024):
    """Fused Pallas head: MLP on image features + L2 norms + scaled cosine logits."""
    B, D = image_features.shape
    C, _ = text_features.shape
    Hid = w1.shape[1]

    f32, bf16 = jnp.float32, jnp.bfloat16
    HID_PAD = _round_up(max(Hid, 128), 128)
    C_PAD = _round_up(max(C, 128), 128)

    # --- one-shot text prep: normalize, scale by exp(logit_scale), transpose, pad ---
    scale = jnp.exp(jnp.asarray(logit_scale, f32)).reshape(1, 1)   # scalar exp hoisted out of kernel
    tT = pl.pallas_call(
        _text_prep_kernel,
        out_shape=jax.ShapeDtypeStruct((D, C_PAD), bf16),
        in_specs=[pl.BlockSpec(memory_space=pltpu.MemorySpace.VMEM),
                  pl.BlockSpec(memory_space=pltpu.MemorySpace.SMEM)],
        out_specs=pl.BlockSpec(memory_space=pltpu.MemorySpace.VMEM),
    )(text_features.astype(f32), scale)

    # --- resident weights: pad hidden dim to a full 128-lane tile, bf16 matmul operands ---
    w1p = jnp.zeros((D, HID_PAD), bf16).at[:, :Hid].set(w1.astype(bf16))
    w2p = jnp.zeros((HID_PAD, D), bf16).at[:Hid, :].set(w2.astype(bf16))
    b1p = jnp.zeros((1, HID_PAD), f32).at[:, :Hid].set(b1.reshape(1, Hid).astype(f32))
    b2p = b2.reshape(1, D).astype(f32)

    # --- image stream: bf16 (halves HBM traffic); batch padded only to a sublane multiple ---
    B_pad = _round_up(max(B, 8), 8)
    x = image_features.astype(bf16)
    if B_pad != B:
        x = jnp.pad(x, ((0, B_pad - B), (0, 0)))

    # --- batch tile: as fat as a 12 MiB streamed-VMEM budget allows (safe under v5e's
    #     16 MiB default scoped VMEM), capped so the grid has >=2 steps when possible
    #     (both v7x TensorCores get work on the "parallel" axis). Ragged last tiles are
    #     handled by Pallas' boundary masking. ---
    bytes_per_row = 2 * D + 4 * C_PAD + 2 * D           # img(bf16) + logits(f32) + feat(bf16)
    vmem_cap_rows = (12 * 1024 * 1024) // (2 * bytes_per_row)
    tb = max(8, (min(tile_b, B_pad, max(8, vmem_cap_rows)) // 8) * 8)
    if B_pad >= 16:
        tb = min(tb, _round_up(pl.cdiv(B_pad, 2), 8))
    grid = (pl.cdiv(B_pad, tb),)

    logits_pad, feat_pad = pl.pallas_call(
        _mlp_clip_head_kernel,
        out_shape=(jax.ShapeDtypeStruct((B_pad, C_PAD), f32),   # lane-dense logits
                   jax.ShapeDtypeStruct((B_pad, D), bf16)),     # normalized image features
        grid_spec=pltpu.PrefetchScalarGridSpec(
            num_scalar_prefetch=0,
            grid=grid,
            in_specs=[
                pl.BlockSpec((tb, D), lambda i: (i, 0)),          # image tile (streamed, bf16)
                pl.BlockSpec((D, C_PAD), lambda i: (0, 0)),       # text^T (resident, bf16)
                pl.BlockSpec((D, HID_PAD), lambda i: (0, 0)),     # w1 (resident, bf16)
                pl.BlockSpec((1, HID_PAD), lambda i: (0, 0)),     # b1 (resident, f32)
                pl.BlockSpec((HID_PAD, D), lambda i: (0, 0)),     # w2 (resident, bf16)
                pl.BlockSpec((1, D), lambda i: (0, 0)),           # b2 (resident, f32)
            ],
            out_specs=(
                pl.BlockSpec((tb, C_PAD), lambda i: (i, 0)),
                pl.BlockSpec((tb, D), lambda i: (i, 0)),
            ),
        ),
        compiler_params=pltpu.CompilerParams(
            dimension_semantics=("parallel",)),
    )(x, tT, w1p, b1p, w2p, b2p)

    return logits_pad[:B, :C], feat_pad[:B, :]


# ---------------------------------------------------------------------------
# Plain-JAX glue: synthetic stand-ins for the CLIP backbones.
# ---------------------------------------------------------------------------
def clip_visual_stub(image_nchw, w_vis):
    B = image_nchw.shape[0]
    x = image_nchw.reshape(B, -1)            # flatten NCHW -> [B, C*H*W]
    return x @ w_vis                         # [B, D]


def clip_encode_text_stub(text_input, tok_emb):
    emb = tok_emb[text_input]                # [n_cls, L, D]
    return emb.mean(axis=1)                  # [n_cls, D]


def reference_head(img_feat, txt_feat, w1, b1, w2, b2, logit_scale):
    h = jnp.maximum(img_feat @ w1 + b1, 0.0)
    y = h @ w2 + b2
    y = y / jnp.linalg.norm(y, axis=-1, keepdims=True)
    t = txt_feat / jnp.linalg.norm(txt_feat, axis=-1, keepdims=True)
    return jnp.exp(logit_scale) * (y @ t.T), y


if __name__ == "__main__":
    key = jax.random.PRNGKey(0)
    # Small shapes consistent with the module's forward.
    B, C_img, H_img, W_img = 2, 3, 16, 16        # image: NCHW
    n_cls, seq_len, vocab = 8, 8, 64             # text_input: [n_cls, seq_len] token ids
    D = 256                                      # embed_dim (clip.visual.output_dim)
    Hid = D // 16                                # mlp_visual hidden dim

    ks = jax.random.split(key, 9)
    image = jax.random.normal(ks[0], (B, C_img, H_img, W_img), jnp.float32)
    text_input = jax.random.randint(ks[1], (n_cls, seq_len), 0, vocab)

    # Synthetic CLIP backbone parameters (deterministic stand-ins).
    w_vis = 0.02 * jax.random.normal(ks[2], (C_img * H_img * W_img, D), jnp.float32)
    tok_emb = 0.02 * jax.random.normal(ks[3], (vocab, D), jnp.float32)

    # mlp_visual parameters, initialized like nn.Linear (uniform +/- 1/sqrt(fan_in)).
    lim1 = 1.0 / np.sqrt(D)
    w1 = jax.random.uniform(ks[4], (D, Hid), jnp.float32, -lim1, lim1)
    b1 = jax.random.uniform(ks[5], (1, Hid), jnp.float32, -lim1, lim1)
    lim2 = 1.0 / np.sqrt(Hid)
    w2 = jax.random.uniform(ks[6], (Hid, D), jnp.float32, -lim2, lim2)
    b2 = jax.random.uniform(ks[7], (1, D), jnp.float32, -lim2, lim2)
    logit_scale = jnp.float32(np.log(1.0 / 0.07))    # CLIP init for logit_scale

    # "clip.visual(image)" and "clip.encode_text(text_input)" (synthetic).
    img_feat = clip_visual_stub(image, w_vis)                 # [B, D]
    txt_feat = clip_encode_text_stub(text_input, tok_emb)     # [n_cls, D]

    logits, img_feat_norm = mlp_custom_clip_head(
        img_feat, txt_feat, w1, b1, w2, b2, logit_scale)
    jax.block_until_ready((logits, img_feat_norm))

    # f32 reference; tolerances account for bf16 MXU operands / bf16 feature output.
    ref_logits, ref_feat = reference_head(img_feat, txt_feat, w1, b1, w2, b2, logit_scale)
    np.testing.assert_allclose(np.asarray(logits, dtype=np.float32), np.asarray(ref_logits),
                               rtol=2e-2, atol=1e-1)
    np.testing.assert_allclose(np.asarray(img_feat_norm, dtype=np.float32), np.asarray(ref_feat),
                               rtol=2e-2, atol=1e-2)

    assert logits.shape == (B, n_cls) and img_feat_norm.shape == (B, D)
    print("KERNEL_OK")
</pallas_src>

<mosaic_0001>
module attributes {stable_mosaic.version = 11 : i64} {
  func.func @_text_prep_kernel(%arg0: memref<8x256xf32, #tpu.memory_space<vmem>>, %arg1: memref<1x1xf32, #tpu.memory_space<smem>>, %arg2: memref<256x128xbf16, #tpu.memory_space<vmem>>) attributes {dimension_semantics = [], scalar_prefetch = 0 : i64, scratch_operands = 0 : i64, tpu.core_type = #tpu.core_type<tc>} {
    %c0 = arith.constant 0 : index
    %c0_0 = arith.constant 0 : index
    %0 = vector.load %arg0[%c0, %c0_0] : memref<8x256xf32, #tpu.memory_space<vmem>>, vector<8x256xf32>
    %1 = arith.mulf %0, %0 : vector<8x256xf32>
    %cst = arith.constant dense<0.000000e+00> : vector<8xf32>
    %2 = vector.multi_reduction <add>, %1, %cst [1] : vector<8x256xf32> to vector<8xf32>
    %3 = vector.shape_cast %2 : vector<8xf32> to vector<8x1xf32>
    %4 = math.rsqrt %3 : vector<8x1xf32>
    %5 = vector.broadcast %4 : vector<8x1xf32> to vector<8x256xf32>
    %6 = arith.mulf %0, %5 : vector<8x256xf32>
    %c0_1 = arith.constant 0 : index
    %c0_2 = arith.constant 0 : index
    %7 = memref.load %arg1[%c0_1, %c0_2] : memref<1x1xf32, #tpu.memory_space<smem>>
    %8 = vector.broadcast %7 : f32 to vector<8x256xf32>
    %9 = arith.mulf %6, %8 : vector<8x256xf32>
    %cst_3 = arith.constant 0.000000e+00 : f32
    %10 = vector.broadcast %cst_3 : f32 to vector<120x256xf32>
    %11 = tpu.concatenate %9, %10 in 0 : vector<8x256xf32>, vector<120x256xf32> -> vector<128x256xf32>
    %12 = tpu.transpose %11, [1, 0] : vector<128x256xf32> -> vector<256x128xf32>
    %13 = arith.truncf %12 : vector<256x128xf32> to vector<256x128xbf16>
    %c0_4 = arith.constant 0 : index
    %c0_5 = arith.constant 0 : index
    %14 = vector.load %arg2[%c0_4, %c0_5] : memref<256x128xbf16, #tpu.memory_space<vmem>>, vector<256x128xbf16>
    tpu.vector_store %arg2[%c0_4, %c0_5], %13 {strides = array<i32>} : memref<256x128xbf16, #tpu.memory_space<vmem>>, vector<256x128xbf16>,
    return
  }
}

</mosaic_0001>

<llo_original>
// kernel: tpu_custom_call.1
$region0: #{tpu_custom_call.1}
  #allocation0 [shape = 'u32[]', space=smem, size = 0x4, offset = 0x4, fixed_abs, tag = 'smem constant byte address 0x4 - core index']
  #allocation1 [shape = 'u32[72,128]{1,0:T(1,128)}', space=vmem, size = 0x9000, scoped, tag = 'internal scratch']
  #allocation2 [shape = 'f32[1,1]{1,0:T(1,128)S(6)}', space=smem, size = 0x200, scoped, tag = 'scoped memory for tpu_custom_call.1']
  %s0 = inlined_call_operand.hbm [shape: f32[8,256], index: 0, kind: input, shape index: {}]
  %s1 = inlined_call_operand.<no memory space> [shape: f32[1,1], index: 1, kind: input, shape index: {}]
  %s2 = inlined_call_operand.hbm [shape: bf16[256,128], index: 2, kind: output, shape index: {}]
  %s3 = sld [smem:[#allocation0]]
  $region22: #{tpu_custom_call.1} parent=0
    _
  %s5 = ssub.s32 1, %s3
  %s6 = scalar_select 0, %s5, %s3
  %7 = sst [smem:[#allocation2]] %s1
  $region1: #{tpu_custom_call.1} parent=0
    #allocation3 [shape = 'u8[8192]{0}', space=vmem, size = 0x2000, scoped, tag = 'input window, operand 0, single buffered']
    #allocation4 [shape = 's32[1]{0}', space=sflag, size = 0x4, scoped, tag = 'scoped memory for tpu_custom_call.1']
    #allocation5 [shape = 's32[1]{0}', space=sflag, size = 0x4, scoped, tag = 'scoped memory for tpu_custom_call.1']
    #allocation6 [shape = 'u8[65536]{0}', space=vmem, size = 0x10000, scoped, tag = 'output window, operand 0, single buffered']
    %8 = vsyncpa [#allocation4], 0
    %9 = vsyncpa [#allocation5], 0
    // Predicated region
    $region2: #{tpu_custom_call.1} parent=1 // pred_check
      _
    $region3: #{tpu_custom_call.1} parent=1 // pred_check_branch
      %11 = sbr.rel (0) target = $region5
    $region4: #{tpu_custom_call.1} parent=1 // pred_region
      %13 = vsyncadd [#allocation4], 0
      %s15 = sshll.u32 %s0, 4
      %s16 = int_to_ptr.hbm [resolvable:$true] %s15
      %s17 = sshll.u32 [#allocation3], 4
      %s18 = int_to_ptr.vmem [resolvable:$true] %s17
      %20 = dma.hbm_to_vmem [thread:$0]  %s16, 256, %s18, [#allocation4]
    $region5: #{tpu_custom_call.1} parent=1 // pred_fallthru
      _
    // Predicated region
    $region6: #{tpu_custom_call.1} parent=1 // pred_check
      _
    $region7: #{tpu_custom_call.1} parent=1 // pred_check_branch
      %22 = sbr.rel (0) target = $region9
    $region8: #{tpu_custom_call.1} parent=1 // pred_region
      _
    $region9: #{tpu_custom_call.1} parent=1 // pred_fallthru
      _
    // Predicated region
    $region10: #{tpu_custom_call.1} parent=1 // pred_check
      _
    $region11: #{tpu_custom_call.1} parent=1 // pred_check_branch
      %24 = sbr.rel (0) target = $region13
    $region12: #{tpu_custom_call.1} parent=1 // pred_region
      %26 = dma.done [#allocation4], 256
    $region13: #{tpu_custom_call.1} parent=1 // pred_fallthru
      _
    %v27 = vld [vmem:[#allocation3] sm:$0xff]
    %v28 = vld [vmem:[#allocation3 + $0x8] sm:$0xff]
    %v29 = vmul.f32 %v27, %v27
    %v30 = vmul.f32 %v28, %v28
    %v31 = vadd.f32 %v29, %v30
    %32 = vadd.xlane.f32.xlu0 %v31
    %v33 = vpop.xlane.xlu0 %32
    %v34 = vrsqrt.pop %v33
    %v35 = vmul.f32 %v34, %v33
    %v36 = vmul.f32 %v35, %v34
    %v37 = vmul.f32 0.5, %v36
    %v38 = vsub.f32 1.5, %v37
    %v39 = vmul.f32 %v34, %v38
    %vm40 = vweird.f32 %v33
    %vm41 = vweird.f32 %v34
    %vm42 = vmor %vm40, %vm41
    %v43 = vsel %vm42, %v34, %v39
    %v44 = vmul.f32 %v27, %v43
    %v45 = vmul.f32 %v28, %v43
    %s46 = sld [smem:[#allocation2]]
    %v47 = vstv %s46
    %v48 = vmul.f32 %v44, %v47
    %v49 = vmul.f32 %v45, %v47
    %50 = vxpose.xlu0.b32.start [1/16] %v48, 128
    %51 = vxpose.xlu0.b32.cont [2/16] 0.0, 128
    %52 = vxpose.xlu0.b32.cont [3/16] 0.0, 128
    %53 = vxpose.xlu0.b32.cont [4/16] 0.0, 128
    %54 = vxpose.xlu0.b32.cont [5/16] 0.0, 128
    %55 = vxpose.xlu0.b32.cont [6/16] 0.0, 128
    %56 = vxpose.xlu0.b32.cont [7/16] 0.0, 128
    %57 = vxpose.xlu0.b32.cont [8/16] 0.0, 128
    %58 = vxpose.xlu0.b32.cont [9/16] 0.0, 128
    %59 = vxpose.xlu0.b32.cont [10/16] 0.0, 128
    %60 = vxpose.xlu0.b32.cont [11/16] 0.0, 128
    %61 = vxpose.xlu0.b32.cont [12/16] 0.0, 128
    %62 = vxpose.xlu0.b32.cont [13/16] 0.0, 128
    %63 = vxpose.xlu0.b32.cont [14/16] 0.0, 128
    %64 = vxpose.xlu0.b32.cont [15/16] 0.0, 128
    %65 = vxpose.xlu0.b32.end [16/16] 0.0, 128
    %v66 = vpop.trf.xlu0
    %v67 = vpop.trf.xlu0
    %v68 = vpop.trf.xlu0
    %v69 = vpop.trf.xlu0
    %v70 = vpop.trf.xlu0
    %v71 = vpop.trf.xlu0
    %v72 = vpop.trf.xlu0
    %v73 = vpop.trf.xlu0
    %v74 = vpop.trf.xlu0
    %v75 = vpop.trf.xlu0
    %v76 = vpop.trf.xlu0
    %v77 = vpop.trf.xlu0
    %v78 = vpop.trf.xlu0
    %v79 = vpop.trf.xlu0
    %v80 = vpop.trf.xlu0
    %v81 = vpop.trf.xlu0
    %82 = vxpose.xlu0.b32.start [1/16] %v49, 128
    %83 = vxpose.xlu0.b32.cont [2/16] 0.0, 128
    %84 = vxpose.xlu0.b32.cont [3/16] 0.0, 128
    %85 = vxpose.xlu0.b32.cont [4/16] 0.0, 128
    %86 = vxpose.xlu0.b32.cont [5/16] 0.0, 128
    %87 = vxpose.xlu0.b32.cont [6/16] 0.0, 128
    %88 = vxpose.xlu0.b32.cont [7/16] 0.0, 128
    %89 = vxpose.xlu0.b32.cont [8/16] 0.0, 128
    %90 = vxpose.xlu0.b32.cont [9/16] 0.0, 128
    %91 = vxpose.xlu0.b32.cont [10/16] 0.0, 128
    %92 = vxpose.xlu0.b32.cont [11/16] 0.0, 128
    %93 = vxpose.xlu0.b32.cont [12/16] 0.0, 128
    %94 = vxpose.xlu0.b32.cont [13/16] 0.0, 128
    %95 = vxpose.xlu0.b32.cont [14/16] 0.0, 128
    %96 = vxpose.xlu0.b32.cont [15/16] 0.0, 128
    %97 = vxpose.xlu0.b32.end [16/16] 0.0, 128
    %v98 = vpop.trf.xlu0
    %v99 = vpop.trf.xlu0
    %v100 = vpop.trf.xlu0
    %v101 = vpop.trf.xlu0
    %v102 = vpop.trf.xlu0
    %v103 = vpop.trf.xlu0
    %v104 = vpop.trf.xlu0
    %v105 = vpop.trf.xlu0
    %v106 = vpop.trf.xlu0
    %v107 = vpop.trf.xlu0
    %v108 = vpop.trf.xlu0
    %v109 = vpop.trf.xlu0
    %v110 = vpop.trf.xlu0
    %v111 = vpop.trf.xlu0
    %v112 = vpop.trf.xlu0
    %v113 = vpop.trf.xlu0
    %v114 = vpack.c.bf16 %v66, %v66
    %v115 = vpack.c.bf16 %v67, %v67
    %v116 = vpack.c.bf16 %v68, %v68
    %v117 = vpack.c.bf16 %v69, %v69
    %v118 = vpack.c.bf16 %v70, %v70
    %v119 = vpack.c.bf16 %v71, %v71
    %v120 = vpack.c.bf16 %v72, %v72
    %v121 = vpack.c.bf16 %v73, %v73
    %v122 = vpack.c.bf16 %v74, %v74
    %v123 = vpack.c.bf16 %v75, %v75
    %v124 = vpack.c.bf16 %v76, %v76
    %v125 = vpack.c.bf16 %v77, %v77
    %v126 = vpack.c.bf16 %v78, %v78
    %v127 = vpack.c.bf16 %v79, %v79
    %v128 = vpack.c.bf16 %v80, %v80
    %v129 = vpack.c.bf16 %v81, %v81
    %v130 = vpack.c.bf16 %v98, %v98
    %v131 = vpack.c.bf16 %v99, %v99
    %v132 = vpack.c.bf16 %v100, %v100
    %v133 = vpack.c.bf16 %v101, %v101
    %v134 = vpack.c.bf16 %v102, %v102
    %v135 = vpack.c.bf16 %v103, %v103
    %v136 = vpack.c.bf16 %v104, %v104
    %v137 = vpack.c.bf16 %v105, %v105
    %v138 = vpack.c.bf16 %v106, %v106
    %v139 = vpack.c.bf16 %v107, %v107
    %v140 = vpack.c.bf16 %v108, %v108
    %v141 = vpack.c.bf16 %v109, %v109
    %v142 = vpack.c.bf16 %v110, %v110
    %v143 = vpack.c.bf16 %v111, %v111
    %v144 = vpack.c.bf16 %v112, %v112
    %v145 = vpack.c.bf16 %v113, %v113
    %146 = vst [vmem:[#allocation6] sm:$0xf] %v114
    %147 = vst [vmem:[#allocation6 + $0x4] sm:$0xf] %v115
    %148 = vst [vmem:[#allocation6 + $0x8] sm:$0xf] %v116
    %149 = vst [vmem:[#allocation6 + $0xc] sm:$0xf] %v117
    %150 = vst [vmem:[#allocation6 + $0x10] sm:$0xf] %v118
    %151 = vst [vmem:[#allocation6 + $0x14] sm:$0xf] %v119
    %152 = vst [vmem:[#allocation6 + $0x18] sm:$0xf] %v120
    %153 = vst [vmem:[#allocation6 + $0x1c] sm:$0xf] %v121
    %154 = vst [vmem:[#allocation6 + $0x20] sm:$0xf] %v122
    %155 = vst [vmem:[#allocation6 + $0x24] sm:$0xf] %v123
    %156 = vst [vmem:[#allocation6 + $0x28] sm:$0xf] %v124
    %157 = vst [vmem:[#allocation6 + $0x2c] sm:$0xf] %v125
    %158 = vst [vmem:[#allocation6 + $0x30] sm:$0xf] %v126
    %159 = vst [vmem:[#allocation6 + $0x34] sm:$0xf] %v127
    %160 = vst [vmem:[#allocation6 + $0x38] sm:$0xf] %v128
    %161 = vst [vmem:[#allocation6 + $0x3c] sm:$0xf] %v129
    %162 = vst [vmem:[#allocation6 + $0x40] sm:$0xf] %v130
    %163 = vst [vmem:[#allocation6 + $0x44] sm:$0xf] %v131
    %164 = vst [vmem:[#allocation6 + $0x48] sm:$0xf] %v132
    %165 = vst [vmem:[#allocation6 + $0x4c] sm:$0xf] %v133
    %166 = vst [vmem:[#allocation6 + $0x50] sm:$0xf] %v134
    %167 = vst [vmem:[#allocation6 + $0x54] sm:$0xf] %v135
    %168 = vst [vmem:[#allocation6 + $0x58] sm:$0xf] %v136
    %169 = vst [vmem:[#allocation6 + $0x5c] sm:$0xf] %v137
    %170 = vst [vmem:[#allocation6 + $0x60] sm:$0xf] %v138
    %171 = vst [vmem:[#allocation6 + $0x64] sm:$0xf] %v139
    %172 = vst [vmem:[#allocation6 + $0x68] sm:$0xf] %v140
    %173 = vst [vmem:[#allocation6 + $0x6c] sm:$0xf] %v141
    %174 = vst [vmem:[#allocation6 + $0x70] sm:$0xf] %v142
    %175 = vst [vmem:[#allocation6 + $0x74] sm:$0xf] %v143
    %176 = vst [vmem:[#allocation6 + $0x78] sm:$0xf] %v144
    %177 = vst [vmem:[#allocation6 + $0x7c] sm:$0xf] %v145
    // Predicated region
    $region14: #{tpu_custom_call.1} parent=1 // pred_check
      _
    $region15: #{tpu_custom_call.1} parent=1 // pred_check_branch
      %179 = sbr.rel (0) target = $region17
    $region16: #{tpu_custom_call.1} parent=1 // pred_region
      %181 = vsyncadd [#allocation5], 0
      %s182 = sshll.u32 [#allocation6], 4
      %s183 = int_to_ptr.vmem [resolvable:$true] %s182
      %s184 = sshll.u32 %s2, 4
      %s185 = int_to_ptr.hbm [resolvable:$true] %s184
      %190 = dma.vmem_to_hbm [thread:$0]  %s183, 2048, %s185, [#allocation5], 64, 64, 4
    $region17: #{tpu_custom_call.1} parent=1 // pred_fallthru
      _
    // Predicated region
    $region18: #{tpu_custom_call.1} parent=1 // pred_check
      _
    $region19: #{tpu_custom_call.1} parent=1 // pred_check_branch
      %192 = sbr.rel (0) target = $region21
    $region20: #{tpu_custom_call.1} parent=1 // pred_region
      %194 = dma.done [#allocation5], 2048
    $region21: #{tpu_custom_call.1} parent=1 // pred_fallthru
      _
    %195 = vsyncpa [#allocation4], 1
    %196 = vsyncpa [#allocation5], 1

</llo_original>
